<compile_context>
chip_gen: v7x
topology: tpu7x:2x2x1
jax: 0.10.0
libtpu: 0.0.40
codegen_flags: <defaults>
</compile_context>

<pallas_src>
import functools

import jax
import jax.numpy as jnp
from jax import lax
from jax.experimental import pallas as pl
from jax.experimental.pallas import tpu as pltpu

IN_FEATURES = 34
LANES = 128


def _round_up(a, m):
    return (a + m - 1) // m * m


def _lr_kernel(x_ref, w_ref, b_ref, o_ref):
    # x_ref: (TILE, 34) VMEM (pipelined)     w_ref: (1, 34) VMEM (resident)
    # b_ref: (1,) SMEM scalar                o_ref: (1, TILE) VMEM, lane-dense
    #
    # MXU contraction over K=34 (trans_b / q@k^T pattern): result (1, TILE)
    # puts samples on the lane axis -> lane-dense output, no sublane->lane
    # relayout, unmasked stores.
    s = lax.dot_general(
        w_ref[...], x_ref[...],
        dimension_numbers=(((1,), (1,)), ((), ())),
        preferred_element_type=jnp.float32,
    )
    o_ref[...] = jax.nn.sigmoid(s + b_ref[0])


@functools.lru_cache(maxsize=None)
def _build_call(n_pad, tile, x_dtype_name):
    x_dtype = jnp.dtype(x_dtype_name)
    x_bytes = x_dtype.itemsize
    grid = (n_pad // tile,)

    # VMEM budget: x block pads 34 -> 128 lanes (tile*128*x_bytes / buffer),
    # the (1, tile) output block pads 1 -> 8 sublanes; both double-buffered.
    need = 2 * tile * LANES * x_bytes + 2 * 8 * tile * 4 + (1 << 20)
    vmem_limit = max(32 << 20, need + (4 << 20))

    cost = pl.CostEstimate(
        flops=2 * n_pad * IN_FEATURES,
        transcendentals=n_pad,
        bytes_accessed=n_pad * (IN_FEATURES * x_bytes + 4) + IN_FEATURES * 4 + 4,
    )

    return pl.pallas_call(
        _lr_kernel,
        out_shape=jax.ShapeDtypeStruct((1, n_pad), jnp.float32),
        grid_spec=pl.GridSpec(
            grid=grid,
            in_specs=[
                pl.BlockSpec((tile, IN_FEATURES), lambda i: (i, 0)),    # x rows (pipelined)
                pl.BlockSpec((1, IN_FEATURES), lambda i: (0, 0)),       # weight row (resident)
                pl.BlockSpec(memory_space=pltpu.MemorySpace.SMEM),      # bias scalar in SMEM
            ],
            out_specs=pl.BlockSpec((1, tile), lambda i: (0, i)),        # lane-dense output
        ),
        compiler_params=pltpu.CompilerParams(
            dimension_semantics=("parallel",),
            vmem_limit_bytes=vmem_limit,
        ),
        cost_estimate=cost,
    )


def lr_forward(x, w, b, *, tile_m=16384, min_rows_for_kernel=2048,
               target_grid_steps=8):
    """sigmoid(x @ w.T + b).

    x: (N, 34) float32 or bfloat16, w: (1, 34), b: (1,)  ->  (N, 1) float32.
    """
    assert x.ndim == 2 and x.shape[1] == IN_FEATURES
    assert tile_m % LANES == 0
    n = x.shape[0]

    if x.dtype not in (jnp.float32, jnp.bfloat16):
        x = x.astype(jnp.float32)
    w = w.reshape(1, IN_FEATURES).astype(x.dtype)   # match MXU operand dtype
    b = b.reshape(1).astype(jnp.float32)

    # Tiny batches: a pallas_call launch + grid step costs more than the op.
    if n < min_rows_for_kernel:
        return jax.nn.sigmoid(
            jnp.dot(x.astype(jnp.float32), w.astype(jnp.float32).T) + b)

    # Tile: big enough to amortize ~0.35 us/step overhead, small enough to
    # keep double-buffered VMEM modest (v7x: 64 MiB physical) and to give
    # ~target_grid_steps steps so "parallel" can shard across v7x's two TCs.
    ideal = -(-n // target_grid_steps)              # cdiv
    tile = min(tile_m, _round_up(ideal, LANES))
    n_pad = _round_up(n, tile)
    if n_pad != n:
        # Zero rows produce sigmoid(b) and are sliced off below.
        x = jnp.pad(x, ((0, n_pad - n), (0, 0)))

    out_row = _build_call(n_pad, tile, jnp.dtype(x.dtype).name)(x, w, b)
    return out_row.reshape(-1)[:n].reshape(n, 1)


if __name__ == "__main__":
    key = jax.random.PRNGKey(0)
    kx, kw, kb, kx2 = jax.random.split(key, 4)

    # Deterministic init mirroring nn.Linear's default U(-1/sqrt(fan_in), +).
    bound = 1.0 / jnp.sqrt(jnp.float32(IN_FEATURES))
    w = jax.random.uniform(kw, (1, IN_FEATURES), jnp.float32, minval=-bound, maxval=bound)
    b = jax.random.uniform(kb, (1,), jnp.float32, minval=-bound, maxval=bound)

    def ref(xx):
        return jax.nn.sigmoid(xx.astype(jnp.float32) @ w.T + b)

    # 1) Tiny batch (the module's typical call) -> plain-XLA bypass path.
    batch = 8
    x = jax.random.normal(kx, (batch, IN_FEATURES), jnp.float32)
    out_small = jax.block_until_ready(lr_forward(x, w, b))
    assert out_small.shape == (batch, 1)
    assert jnp.allclose(out_small, ref(x), atol=1e-5, rtol=1e-5)

    # 2) Same tiny batch forced through the Pallas kernel (small-shape run).
    #    Looser tolerance: Mosaic may emulate the f32 MXU dot with bf16 passes.
    out_k = jax.block_until_ready(lr_forward(x, w, b, min_rows_for_kernel=1))
    assert out_k.shape == (batch, 1)
    assert jnp.allclose(out_k, ref(x), atol=1e-2)

    # 3) Multi-step grid (8 steps) + tail padding through the kernel.
    n2 = 4500
    x2 = jax.random.normal(kx2, (n2, IN_FEATURES), jnp.float32)
    out2 = jax.block_until_ready(lr_forward(x2, w, b))
    assert out2.shape == (n2, 1)
    assert jnp.allclose(out2, ref(x2), atol=1e-2)

    # 4) bfloat16 activations (halves HBM read traffic); f32 accumulate/sigmoid.
    out3 = jax.block_until_ready(lr_forward(x2.astype(jnp.bfloat16), w, b))
    assert out3.shape == (n2, 1)
    assert jnp.allclose(out3, ref(x2.astype(jnp.bfloat16)), atol=2e-2)

    print("KERNEL_OK")
</pallas_src>

<mosaic_0001>
module attributes {stable_mosaic.version = 11 : i64} {
  func.func @_lr_kernel(%arg0: i32, %arg1: memref<128x34xf32, #tpu.memory_space<vmem>>, %arg2: memref<1x34xf32, #tpu.memory_space<vmem>>, %arg3: memref<1xf32, #tpu.memory_space<smem>>, %arg4: memref<1x128xf32, #tpu.memory_space<vmem>>) attributes {dimension_semantics = [#tpu.dimension_semantics<parallel>], iteration_bounds = array<i64: 1>, scalar_prefetch = 0 : i64, scratch_operands = 0 : i64, tpu.core_type = #tpu.core_type<tc>, window_params = [{transform_indices = @transform_0, window_bounds = array<i64: 128, 34>}, {pipeline_mode = #tpu.pipeline_mode<synchronous>, transform_indices = @transform_1, window_bounds = array<i64: 1, 34>}, {transform_indices = @transform_2, window_bounds = array<i64: 1>}, {transform_indices = @transform_3, window_bounds = array<i64: 1, 128>}]} {
    %c0 = arith.constant 0 : index
    %c0_0 = arith.constant 0 : index
    %0 = vector.load %arg2[%c0, %c0_0] : memref<1x34xf32, #tpu.memory_space<vmem>>, vector<1x34xf32>
    %c0_1 = arith.constant 0 : index
    %c0_2 = arith.constant 0 : index
    %1 = vector.load %arg1[%c0_1, %c0_2] : memref<128x34xf32, #tpu.memory_space<vmem>>, vector<128x34xf32>
    %cst = arith.constant dense<0.000000e+00> : vector<1x128xf32>
    %2 = tpu.matmul %0, %1, %cst {dimension_numbers = #tpu.dot_dimension_numbers<[1], [1], [0], [0], [0, 0, 1, 0], [], []>} : vector<1x34xf32>, vector<128x34xf32>, vector<1x128xf32> -> vector<1x128xf32>
    %c0_3 = arith.constant 0 : index
    %3 = memref.load %arg3[%c0_3] : memref<1xf32, #tpu.memory_space<smem>>
    %4 = vector.broadcast %3 : f32 to vector<1x128xf32>
    %5 = arith.addf %2, %4 : vector<1x128xf32>
    %6 = arith.negf %5 : vector<1x128xf32>
    %7 = math.exp %6 : vector<1x128xf32>
    %cst_4 = arith.constant 1.000000e+00 : f32
    %8 = vector.broadcast %cst_4 : f32 to vector<1x128xf32>
    %9 = arith.addf %8, %7 : vector<1x128xf32>
    %10 = arith.divf %8, %9 : vector<1x128xf32>
    %c0_5 = arith.constant 0 : index
    %c0_6 = arith.constant 0 : index
    %11 = vector.load %arg4[%c0_5, %c0_6] : memref<1x128xf32, #tpu.memory_space<vmem>>, vector<1x128xf32>
    tpu.vector_store %arg4[%c0_5, %c0_6], %10 {strides = array<i32>} : memref<1x128xf32, #tpu.memory_space<vmem>>, vector<1x128xf32>,
    return
  }
  func.func @transform_0(%arg0: i32) -> (i32, i32) {
    %c0_i32 = arith.constant 0 : i32
    %c0_i32_0 = arith.constant 0 : i32
    return %arg0, %c0_i32 : i32, i32
  }
  func.func @transform_1(%arg0: i32) -> (i32, i32) {
    %c0_i32 = arith.constant 0 : i32
    %c0_i32_0 = arith.constant 0 : i32
    %c0_i32_1 = arith.constant 0 : i32
    return %c0_i32, %c0_i32_0 : i32, i32
  }
  func.func @transform_2(%arg0: i32) -> i32 {
    %c0_i32 = arith.constant 0 : i32
    %c0_i32_0 = arith.constant 0 : i32
    return %c0_i32 : i32
  }
  func.func @transform_3(%arg0: i32) -> (i32, i32) {
    %c0_i32 = arith.constant 0 : i32
    %c0_i32_0 = arith.constant 0 : i32
    return %c0_i32, %arg0 : i32, i32
  }
}

</mosaic_0001>

<llo_original>
// kernel: tpu_custom_call.1
$region0: #{tpu_custom_call.1}
  #allocation0 [shape = 'u32[]', space=smem, size = 0x4, offset = 0x4, fixed_abs, tag = 'smem constant byte address 0x4 - core index']
  #allocation1 [shape = 'u32[144,128]{1,0:T(1,128)}', space=vmem, size = 0x12000, scoped, tag = 'internal scratch']
  #allocation2 [shape = 'f32[1]{0:T(128)S(6)}', space=smem, size = 0x200, scoped, tag = 'scoped memory for tpu_custom_call.1']
  %s0 = inlined_call_operand.vmem [shape: f32[128,34], index: 0, kind: input, shape index: {}]
  %s1 = inlined_call_operand.vmem [shape: f32[1,34], index: 1, kind: input, shape index: {}]
  %s2 = inlined_call_operand.<no memory space> [shape: f32[1], index: 2, kind: input, shape index: {}]
  %s3 = inlined_call_operand.hbm [shape: f32[1,128], index: 3, kind: output, shape index: {}]
  %s4 = sld [smem:[#allocation0]]
  $region22: #{tpu_custom_call.1} parent=0
    _
  %s6 = ssub.s32 1, %s4
  %s7 = scalar_select 0, %s6, %s4
  %8 = sst [smem:[#allocation2]] %s2
  $region1: #{tpu_custom_call.1} parent=0
    #allocation3 [shape = 'u8[512]{0}', space=vmem, size = 0x400, scoped, tag = 'output window, operand 0, single buffered']
    #allocation4 [shape = 's32[1]{0}', space=sflag, size = 0x4, scoped, tag = 'scoped memory for tpu_custom_call.1']
    %9 = vsyncpa [#allocation4], 0
    // Predicated region
    $region2: #{tpu_custom_call.1} parent=1 // pred_check
      _
    $region3: #{tpu_custom_call.1} parent=1 // pred_check_branch
      %11 = sbr.rel (0) target = $region5
    $region4: #{tpu_custom_call.1} parent=1 // pred_region
      _
    $region5: #{tpu_custom_call.1} parent=1 // pred_fallthru
      _
    // Predicated region
    $region6: #{tpu_custom_call.1} parent=1 // pred_check
      _
    $region7: #{tpu_custom_call.1} parent=1 // pred_check_branch
      %13 = sbr.rel (0) target = $region9
    $region8: #{tpu_custom_call.1} parent=1 // pred_region
      _
    $region9: #{tpu_custom_call.1} parent=1 // pred_fallthru
      _
    // Predicated region
    $region10: #{tpu_custom_call.1} parent=1 // pred_check
      _
    $region11: #{tpu_custom_call.1} parent=1 // pred_check_branch
      %15 = sbr.rel (0) target = $region13
    $region12: #{tpu_custom_call.1} parent=1 // pred_region
      _
    $region13: #{tpu_custom_call.1} parent=1 // pred_fallthru
      _
    %v16 = vld [vmem:[%s1] sm:$0x1]
    %v17 = vld [vmem:[%s0] sm:$0xff]
    %v18 = vld [vmem:[%s0 + $0x8] sm:$0xff]
    %v19 = vld [vmem:[%s0 + $0x10] sm:$0xff]
    %v20 = vld [vmem:[%s0 + $0x18] sm:$0xff]
    %v21 = vld [vmem:[%s0 + $0x20] sm:$0xff]
    %v22 = vld [vmem:[%s0 + $0x28] sm:$0xff]
    %v23 = vld [vmem:[%s0 + $0x30] sm:$0xff]
    %v24 = vld [vmem:[%s0 + $0x38] sm:$0xff]
    %v25 = vld [vmem:[%s0 + $0x40] sm:$0xff]
    %v26 = vld [vmem:[%s0 + $0x48] sm:$0xff]
    %v27 = vld [vmem:[%s0 + $0x50] sm:$0xff]
    %v28 = vld [vmem:[%s0 + $0x58] sm:$0xff]
    %v29 = vld [vmem:[%s0 + $0x60] sm:$0xff]
    %v30 = vld [vmem:[%s0 + $0x68] sm:$0xff]
    %v31 = vld [vmem:[%s0 + $0x70] sm:$0xff]
    %v32 = vld [vmem:[%s0 + $0x78] sm:$0xff]
    %s33 = sld [smem:[#allocation2]]
    %v34 = vstv %s33
    %vm35 = vcmask 277504
    %v37 = vsel %vm35, %v16, 0
    %v40 = vsel %vm35, %v17, 0
    %v43 = vsel %vm35, %v18, 0
    %v46 = vsel %vm35, %v19, 0
    %v49 = vsel %vm35, %v20, 0
    %v52 = vsel %vm35, %v21, 0
    %v55 = vsel %vm35, %v22, 0
    %v58 = vsel %vm35, %v23, 0
    %v61 = vsel %vm35, %v24, 0
    %v64 = vsel %vm35, %v25, 0
    %v67 = vsel %vm35, %v26, 0
    %v70 = vsel %vm35, %v27, 0
    %v73 = vsel %vm35, %v28, 0
    %v76 = vsel %vm35, %v29, 0
    %v79 = vsel %vm35, %v30, 0
    %v82 = vsel %vm35, %v31, 0
    %v85 = vsel %vm35, %v32, 0
    %87 = vmatprep.subr.mxu0 0.0
    %88 = vmatpush1.xpose.msra.mxu0 %v40
    %89 = vmatprep.subr.mxu0 0.0
    %90 = vmatpush1.xpose.msra.mxu0 %v43
    %91 = vmatprep.subr.mxu0 0.0
    %92 = vmatpush1.xpose.msra.mxu0 %v46
    %93 = vmatprep.subr.mxu0 0.0
    %94 = vmatpush1.xpose.msra.mxu0 %v49
    %95 = vmatprep.subr.mxu0 0.0
    %96 = vmatpush1.xpose.msra.mxu0 %v52
    %97 = vmatprep.subr.mxu0 0.0
    %98 = vmatpush1.xpose.msra.mxu0 %v55
    %99 = vmatprep.subr.mxu0 0.0
    %100 = vmatpush1.xpose.msra.mxu0 %v58
    %101 = vmatprep.subr.mxu0 0.0
    %102 = vmatpush1.xpose.msra.mxu0 %v61
    %103 = vmatprep.subr.mxu0 0.0
    %104 = vmatpush1.xpose.msra.mxu0 %v64
    %105 = vmatprep.subr.mxu0 0.0
    %106 = vmatpush1.xpose.msra.mxu0 %v67
    %107 = vmatprep.subr.mxu0 0.0
    %108 = vmatpush1.xpose.msra.mxu0 %v70
    %109 = vmatprep.subr.mxu0 0.0
    %110 = vmatpush1.xpose.msra.mxu0 %v73
    %111 = vmatprep.subr.mxu0 0.0
    %112 = vmatpush1.xpose.msra.mxu0 %v76
    %113 = vmatprep.subr.mxu0 0.0
    %114 = vmatpush1.xpose.msra.mxu0 %v79
    %115 = vmatprep.subr.mxu0 0.0
    %116 = vmatpush1.xpose.msra.mxu0 %v82
    %117 = vmatprep.subr.mxu0 0.0
    %118 = vmatpush1.xpose.msra.mxu0 %v85
    %119 = vmatprep.subr.mxu0 0.0
    %120 = vmatpush1.xpose.msra.mxu0 0.0
    %121 = vmatprep.subr.mxu0 0.0
    %122 = vmatpush1.xpose.msra.mxu0 0.0
    %123 = vmatprep.subr.mxu0 0.0
    %124 = vmatpush1.xpose.msra.mxu0 0.0
    %125 = vmatprep.subr.mxu0 0.0
    %126 = vmatpush1.xpose.msra.mxu0 0.0
    %127 = vmatprep.subr.mxu0 0.0
    %128 = vmatpush1.xpose.msra.mxu0 0.0
    %129 = vmatprep.subr.mxu0 0.0
    %130 = vmatpush1.xpose.msra.mxu0 0.0
    %131 = vmatprep.subr.mxu0 0.0
    %132 = vmatpush1.xpose.msra.mxu0 0.0
    %133 = vmatprep.subr.mxu0 0.0
    %134 = vmatpush1.xpose.msra.mxu0 0.0
    %135 = vmatprep.subr.mxu0 0.0
    %136 = vmatpush1.xpose.msra.mxu0 0.0
    %137 = vmatprep.subr.mxu0 0.0
    %138 = vmatpush1.xpose.msra.mxu0 0.0
    %139 = vmatprep.subr.mxu0 0.0
    %140 = vmatpush1.xpose.msra.mxu0 0.0
    %141 = vmatprep.subr.mxu0 0.0
    %142 = vmatpush1.xpose.msra.mxu0 0.0
    %143 = vmatprep.subr.mxu0 0.0
    %144 = vmatpush1.xpose.msra.mxu0 0.0
    %145 = vmatprep.subr.mxu0 0.0
    %146 = vmatpush1.xpose.msra.mxu0 0.0
    %147 = vmatprep.subr.mxu0 0.0
    %148 = vmatpush1.xpose.msra.mxu0 0.0
    %149 = vmatprep.subr.mxu0 0.0
    %150 = vmatpush1.xpose.msra.mxu0 0.0
    %151 = vmatprep.mubr.f32.mxu0 0.0
    %152 = vmatmul.mubr.f32.gmra.mrb[0].mxu0 %v37
    %v153 = vpop.f32.mrb[0].mxu0
    %v154 = vadd.f32 %v34, %v153
    %v155 = vpop.f32.mrb[0].mxu0
    %156 = vdwg.mxu0
    %v157 = vxor.u32 %v154, 2147483648
    %v158 = vmul.f32 %v157, 1.442695
    %v159 = vpow.pop %v158
    %v160 = vadd.f32 %v159, 1.0
    %v161 = vrcp.pop %v160
    %v162 = vmul.f32 1.0, %v161
    %163 = vst [vmem:[#allocation3] sm:$0x1] %v162
    // Predicated region
    $region14: #{tpu_custom_call.1} parent=1 // pred_check
      _
    $region15: #{tpu_custom_call.1} parent=1 // pred_check_branch
      %165 = sbr.rel (0) target = $region17
    $region16: #{tpu_custom_call.1} parent=1 // pred_region
      %s167 = ssub.s32 16, 16
      %168 = vsyncadd [#allocation4], %s167
      %s170 = sshll.u32 [#allocation3], 4
      %s171 = int_to_ptr.vmem [resolvable:$true] %s170
      %173 = dma.vmem_to_hbm [thread:$0]  %s171, 16, %s3, [#allocation4]
    $region17: #{tpu_custom_call.1} parent=1 // pred_fallthru
      _
    // Predicated region
    $region18: #{tpu_custom_call.1} parent=1 // pred_check
      _
    $region19: #{tpu_custom_call.1} parent=1 // pred_check_branch
      %175 = sbr.rel (0) target = $region21
    $region20: #{tpu_custom_call.1} parent=1 // pred_region
      %176 = dma.done [#allocation4], 16
    $region21: #{tpu_custom_call.1} parent=1 // pred_fallthru
      _
    %177 = vsyncpa [#allocation4], 1

</llo_original>
